<compile_context>
chip_gen: v5e
topology: v5e:2x2
jax: 0.10.0
libtpu: 0.0.40
codegen_flags: <defaults>
</compile_context>

<pallas_src>
import functools

import jax
import jax.numpy as jnp
from jax.experimental import pallas as pl
from jax.experimental.pallas import tpu as pltpu


def _round_up(v, m):
    return (v + m - 1) // m * m


def _pick_tile(requested, n_pad):
    """Largest multiple of 128 that is <= requested and divides n_pad."""
    t = min(_round_up(requested, 128), n_pad)
    while n_pad % t:
        t -= 128
    return t


# ---------------------------------------------------------------------------
# Kernel 1: scaled feature transform  XW_s = diag(d^-1/2) @ (X @ W)   (bf16)
# ---------------------------------------------------------------------------
def _xw_kernel(x_ref, w_ref, dis_ref, o_ref):
    xw = jnp.dot(x_ref[...], w_ref[...], preferred_element_type=jnp.float32)
    o_ref[...] = (xw * dis_ref[...]).astype(o_ref.dtype)


# ---------------------------------------------------------------------------
# Kernel 2: aggregation  H = relu( diag(d^-1/2) @ (A @ XW_s) + b )
#   A streamed as int8 {0,1}; f32 accumulation directly into the resident
#   output block; bias / left D^{-1/2} scale / ReLU applied once in finalize.
# ---------------------------------------------------------------------------
def _agg_kernel(a_ref, xw_ref, dis_ref, b_ref, o_ref, *, tk):
    k = pl.program_id(1)

    @pl.when(k == 0)
    def _init():
        o_ref[...] = jnp.zeros_like(o_ref)

    if xw_ref.shape[0] == tk:
        # Streaming fallback: the (tk, C) block for this k was DMA'd in.
        xw = xw_ref[...]
    else:
        # Fully VMEM-resident XW_s: slice the k-th contraction block.
        start = pl.multiple_of(k * tk, 128)
        xw = xw_ref[pl.ds(start, tk), :]

    # int8 {0,1} -> bf16 (exact).  Two-step convert (i8->f32->bf16) for a
    # robust Mosaic lowering; cost is hidden under the MXU/DMA.
    a = a_ref[...].astype(jnp.float32).astype(jnp.bfloat16)
    o_ref[...] += jnp.dot(a, xw, preferred_element_type=jnp.float32)

    @pl.when(k == pl.num_programs(1) - 1)
    def _finalize():
        o_ref[...] = jnp.maximum(o_ref[...] * dis_ref[...] + b_ref[...], 0.0)


# ---------------------------------------------------------------------------
# Wrapper
# ---------------------------------------------------------------------------
def gcn_forward(a_bin, d_inv_sqrt, x, w, b, *, tm=512, tk=512,
                resident_xw_bytes=8 * 1024 * 1024):
    """Single-layer GCN forward: relu(D^-1/2 A D^-1/2 X W + b).

    a_bin:      [N, N] binary adjacency WITH self-loops (0/1, any int/float dtype).
    d_inv_sqrt: [N]    per-node D^{-1/2}.
    x: [N, F], w: [F, C], b: [1, C] (or [C]).  Returns [N, C] float32.
    """
    n, f_in = x.shape
    c = w.shape[1]

    # Lane-dense output: pad class dim to a multiple of 128.
    c_pad = _round_up(max(c, 128), 128)

    # Pad N only to 128; choose tiles that divide n_pad exactly.
    n_pad = _round_up(n, 128)
    tm = _pick_tile(tm, n_pad)
    tk = _pick_tile(tk, n_pad)
    if n_pad >= 256 and n_pad // tm < 2:
        # Keep >= 2 row tiles so both v7x TensorCores get work.
        tm = _pick_tile(n_pad // 2, n_pad)

    # A stays int8 (half the bytes of bf16); skip the copy entirely if the
    # caller already provides an aligned int8 adjacency.
    if a_bin.shape == (n_pad, n_pad) and a_bin.dtype == jnp.int8:
        a_p = a_bin
    else:
        a_p = jnp.zeros((n_pad, n_pad), jnp.int8).at[:n, :n].set(
            a_bin.astype(jnp.int8))
    x_p = jnp.zeros((n_pad, f_in), jnp.bfloat16).at[:n, :].set(
        x.astype(jnp.bfloat16))
    w_p = jnp.zeros((f_in, c_pad), jnp.bfloat16).at[:, :c].set(
        w.astype(jnp.bfloat16))
    b_p = jnp.zeros((1, c_pad), jnp.float32).at[:, :c].set(
        jnp.reshape(b, (1, -1)).astype(jnp.float32))
    dis_p = jnp.zeros((n_pad, 1), jnp.float32).at[:n, 0].set(
        d_inv_sqrt.astype(jnp.float32))

    # Kernel 1: XW_s computed once (right D^{-1/2} scale fused here).
    xw = pl.pallas_call(
        _xw_kernel,
        out_shape=jax.ShapeDtypeStruct((n_pad, c_pad), jnp.bfloat16),
        grid_spec=pltpu.PrefetchScalarGridSpec(
            num_scalar_prefetch=0,
            grid=(n_pad // tm,),
            in_specs=[
                pl.BlockSpec((tm, f_in), lambda i: (i, 0)),
                pl.BlockSpec((f_in, c_pad), lambda i: (0, 0)),
                pl.BlockSpec((tm, 1), lambda i: (i, 0)),
            ],
            out_specs=pl.BlockSpec((tm, c_pad), lambda i: (i, 0)),
        ),
        compiler_params=pltpu.CompilerParams(
            dimension_semantics=("parallel",),
        ),
    )(x_p, w_p, dis_p)

    # Kernel 2: aggregation.  XW_s resident in VMEM when it fits.
    resident = n_pad * c_pad * 2 <= resident_xw_bytes
    if resident:
        xw_spec = pl.BlockSpec((n_pad, c_pad), lambda i, k: (0, 0))
    else:
        xw_spec = pl.BlockSpec((tk, c_pad), lambda i, k: (k, 0))

    out = pl.pallas_call(
        functools.partial(_agg_kernel, tk=tk),
        out_shape=jax.ShapeDtypeStruct((n_pad, c_pad), jnp.float32),
        grid_spec=pltpu.PrefetchScalarGridSpec(
            num_scalar_prefetch=0,
            grid=(n_pad // tm, n_pad // tk),
            in_specs=[
                pl.BlockSpec((tm, tk), lambda i, k: (i, k)),     # A tile (int8)
                xw_spec,                                         # XW_s
                pl.BlockSpec((tm, 1), lambda i, k: (i, 0)),      # d^{-1/2} rows
                pl.BlockSpec((1, c_pad), lambda i, k: (0, 0)),   # bias
            ],
            out_specs=pl.BlockSpec((tm, c_pad), lambda i, k: (i, 0)),
        ),
        compiler_params=pltpu.CompilerParams(
            dimension_semantics=("parallel", "arbitrary"),
            vmem_limit_bytes=48 * 1024 * 1024,
        ),
    )(a_p, xw, dis_p, b_p)

    return out[:n, :c]


# ---------------------------------------------------------------------------
# JAX glue: synthetic graph + GraphConv parameter init (deterministic)
# ---------------------------------------------------------------------------
def build_binary_graph(key, n_nodes, p_edge=0.1):
    """Symmetric binary adjacency with self-loops (int8) and its D^{-1/2}."""
    mask = jax.random.bernoulli(key, p_edge, (n_nodes, n_nodes))
    a = jnp.logical_or(mask, mask.T)
    a = jnp.logical_or(a, jnp.eye(n_nodes, dtype=bool))
    a_bin = a.astype(jnp.int8)
    deg = jnp.sum(a_bin.astype(jnp.float32), axis=1)
    d_inv_sqrt = jnp.where(deg > 0, 1.0 / jnp.sqrt(deg), 0.0)
    return a_bin, d_inv_sqrt


def init_graphconv_params(key, in_feats, n_classes):
    """GraphConv init: xavier-uniform weight, zero bias."""
    limit = jnp.sqrt(6.0 / (in_feats + n_classes))
    w = jax.random.uniform(key, (in_feats, n_classes), jnp.float32, -limit, limit)
    b = jnp.zeros((1, n_classes), jnp.float32)
    return w, b


if __name__ == "__main__":
    # Small shapes; tm=tk=128 so the grid is (2, 2) and the accumulate /
    # resident-XW-slice / parallel-row paths all get exercised.
    N_NODES = 256
    IN_FEATS = 32
    N_CLASSES = 16

    key = jax.random.PRNGKey(0)
    k_graph, k_feat, k_w = jax.random.split(key, 3)

    a_bin, d_inv_sqrt = build_binary_graph(k_graph, N_NODES)
    x = jax.random.normal(k_feat, (N_NODES, IN_FEATS), jnp.float32)
    w, b = init_graphconv_params(k_w, IN_FEATS, N_CLASSES)

    out = gcn_forward(a_bin, d_inv_sqrt, x, w, b, tm=128, tk=128)
    out = jax.block_until_ready(out)

    # Reference in plain JAX, mirroring the kernel's quantization points
    # (bf16 X/W, bf16 round-trip of the scaled XW; A is exact binary).
    x_q = x.astype(jnp.bfloat16).astype(jnp.float32)
    w_q = w.astype(jnp.bfloat16).astype(jnp.float32)
    xw_q = ((x_q @ w_q) * d_inv_sqrt[:, None]).astype(jnp.bfloat16).astype(jnp.float32)
    ref = jnp.maximum(
        d_inv_sqrt[:, None] * (a_bin.astype(jnp.float32) @ xw_q) + b, 0.0)

    assert out.shape == (N_NODES, N_CLASSES)
    assert jnp.allclose(out, ref, atol=5e-3, rtol=5e-3), float(
        jnp.max(jnp.abs(out - ref)))

    print("KERNEL_OK")
</pallas_src>

<mosaic_0001>
module attributes {stable_mosaic.version = 11 : i64} {
  func.func @_xw_kernel(%arg0: i32, %arg1: memref<128x32xbf16, #tpu.memory_space<vmem>>, %arg2: memref<32x128xbf16, #tpu.memory_space<vmem>>, %arg3: memref<128x1xf32, #tpu.memory_space<vmem>>, %arg4: memref<128x128xbf16, #tpu.memory_space<vmem>>) attributes {dimension_semantics = [#tpu.dimension_semantics<parallel>], iteration_bounds = array<i64: 2>, scalar_prefetch = 0 : i64, scratch_operands = 0 : i64, tpu.core_type = #tpu.core_type<tc>, window_params = [{transform_indices = @transform_0, window_bounds = array<i64: 128, 32>}, {pipeline_mode = #tpu.pipeline_mode<synchronous>, transform_indices = @transform_1, window_bounds = array<i64: 32, 128>}, {transform_indices = @transform_2, window_bounds = array<i64: 128, 1>}, {transform_indices = @transform_3, window_bounds = array<i64: 128, 128>}]} {
    %c0 = arith.constant 0 : index
    %c0_0 = arith.constant 0 : index
    %0 = vector.load %arg1[%c0, %c0_0] : memref<128x32xbf16, #tpu.memory_space<vmem>>, vector<128x32xbf16>
    %c0_1 = arith.constant 0 : index
    %c0_2 = arith.constant 0 : index
    %1 = vector.load %arg2[%c0_1, %c0_2] : memref<32x128xbf16, #tpu.memory_space<vmem>>, vector<32x128xbf16>
    %cst = arith.constant dense<0.000000e+00> : vector<128x128xf32>
    %2 = tpu.matmul %0, %1, %cst {dimension_numbers = #tpu.dot_dimension_numbers<[1], [0], [0], [1], [0, 0, 1, 1], [], []>} : vector<128x32xbf16>, vector<32x128xbf16>, vector<128x128xf32> -> vector<128x128xf32>
    %c0_3 = arith.constant 0 : index
    %c0_4 = arith.constant 0 : index
    %3 = vector.load %arg3[%c0_3, %c0_4] : memref<128x1xf32, #tpu.memory_space<vmem>>, vector<128x1xf32>
    %4 = vector.broadcast %3 : vector<128x1xf32> to vector<128x128xf32>
    %5 = arith.mulf %2, %4 : vector<128x128xf32>
    %6 = arith.truncf %5 : vector<128x128xf32> to vector<128x128xbf16>
    %c0_5 = arith.constant 0 : index
    %c0_6 = arith.constant 0 : index
    %7 = vector.load %arg4[%c0_5, %c0_6] : memref<128x128xbf16, #tpu.memory_space<vmem>>, vector<128x128xbf16>
    tpu.vector_store %arg4[%c0_5, %c0_6], %6 {strides = array<i32>} : memref<128x128xbf16, #tpu.memory_space<vmem>>, vector<128x128xbf16>,
    return
  }
  func.func @transform_0(%arg0: i32) -> (i32, i32) {
    %c0_i32 = arith.constant 0 : i32
    %c0_i32_0 = arith.constant 0 : i32
    return %arg0, %c0_i32 : i32, i32
  }
  func.func @transform_1(%arg0: i32) -> (i32, i32) {
    %c0_i32 = arith.constant 0 : i32
    %c0_i32_0 = arith.constant 0 : i32
    %c0_i32_1 = arith.constant 0 : i32
    return %c0_i32, %c0_i32_0 : i32, i32
  }
  func.func @transform_2(%arg0: i32) -> (i32, i32) {
    %c0_i32 = arith.constant 0 : i32
    %c0_i32_0 = arith.constant 0 : i32
    return %arg0, %c0_i32 : i32, i32
  }
  func.func @transform_3(%arg0: i32) -> (i32, i32) {
    %c0_i32 = arith.constant 0 : i32
    %c0_i32_0 = arith.constant 0 : i32
    return %arg0, %c0_i32 : i32, i32
  }
}

</mosaic_0001>

<llo_original>
// kernel: tpu_custom_call.1
$region0: #{tpu_custom_call.1}
  #allocation0 [shape = 'u32[]', space=smem, size = 0x4, offset = 0x4, fixed_abs, tag = 'smem constant byte address 0x4 - core index']
  #allocation1 [shape = 'u32[72,128]{1,0:T(1,128)}', space=vmem, size = 0x9000, scoped, tag = 'internal scratch']
  %s0 = inlined_call_operand.vmem [shape: bf16[256,32], index: 0, kind: input, shape index: {}]
  %s1 = inlined_call_operand.vmem [shape: bf16[32,128], index: 1, kind: input, shape index: {}]
  %s2 = inlined_call_operand.vmem [shape: f32[256,1], index: 2, kind: input, shape index: {}]
  %s3 = inlined_call_operand.hbm [shape: bf16[256,128], index: 3, kind: output, shape index: {}]
  %s4 = sld [smem:[#allocation0]]
  $region45: #{tpu_custom_call.1} parent=0
    _
  %s6 = ssub.s32 1, %s4
  %s7 = scalar_select 0, %s6, %s4
  $region1: #{tpu_custom_call.1} parent=0
    #allocation2 [shape = 'u8[65536]{0}', space=vmem, size = 0x10000, scoped, tag = 'output window, operand 0']
    #allocation3 [shape = 's32[2]{0}', space=sflag, size = 0x8, scoped, tag = 'scoped memory for tpu_custom_call.1']
    %8 = vsyncpa [#allocation3], 0
    %s9 = scalar_lea.sflag [#allocation3], 1
    %10 = vsyncpa %s9, 0
    loop: start=0, step=1, limit=4
    $region2: #{tpu_custom_call.1} parent=1 // loop_pre_header
      _
    $region3: #{tpu_custom_call.1} parent=1 // loop_header
      %s12 = sphi 0, %s16
      %p13 = scmp.ge.s32.totalorder %s12, 4
      %s22 = sphi 0, %s24
      %s25 = sphi 0, %s22
      %s26 = sphi 0, %s25
      %s42 = sphi 0, %s26
      %s46 = sphi 0, %s46
      %s48 = sphi 0, %s46
      %s49 = sphi 0, %s48
      %s63 = sphi 0, %s49
      %s69 = sphi 0, %s71
      %s72 = sphi 0, %s69
      %s73 = sphi 0, %s72
      %s89 = sphi 0, %s73
      %s95 = sphi 0, %s97
      %s98 = sphi 0, %s95
      %s99 = sphi 0, %s98
      %s115 = sphi 0, %s99
    $region4: #{tpu_custom_call.1} parent=1 // loop_header_branch
      %15 = sbr.rel (%p13) target = $region8
    $region5: #{tpu_custom_call.1} parent=1 // loop_body
      %s17 = ssub.s32 %s12, 1
      %s18 = ssub.s32 %s12, 2
      %s19 = sadd.s32 %s12, 1
      %s20 = ssub.s32 %s12, %s19
      %p21 = scmp.eq.s32.totalorder %s20, 0
      %s23 = sadd.s32 %s22, 1
      %s24 = scalar_select %p21, %s22, %s23
      %p27 = pneg %p21
      %p28 = scmp.eq.s32.totalorder %s12, 1
      %p29 = por %p27, %p28
      %p30 = scmp.ne.s32.totalorder %s22, %s25
      %p31 = scmp.eq.s32.totalorder %s12, 0
      %p32 = por %p30, %p31
      %p33 = scmp.ne.s32.totalorder %s22, %s25
      %p34 = scmp.eq.s32.totalorder %s17, 1
      %p35 = por %p33, %p34
      %p36 = scmp.ne.s32.totalorder %s25, %s26
      %p37 = scmp.eq.s32.totalorder %s17, 0
      %p38 = por %p36, %p37
      %p39 = scmp.ne.s32.totalorder %s25, %s26
      %p40 = scmp.eq.s32.totalorder %s18, 1
      %p41 = por %p39, %p40
      %p43 = scmp.ne.s32.totalorder %s26, %s42
      %p44 = scmp.eq.s32.totalorder %s18, 0
      %p45 = por %p43, %p44
      %s47 = sadd.s32 %s46, 1
      %p50 = scmp.eq.s32.totalorder %s12, 1
      %p51 = scmp.ne.s32.totalorder %s46, %s48
      %p52 = scmp.eq.s32.totalorder %s12, 0
      %p53 = por %p51, %p52
      %p54 = scmp.ne.s32.totalorder %s46, %s48
      %p55 = scmp.eq.s32.totalorder %s17, 1
      %p56 = por %p54, %p55
      %p57 = scmp.ne.s32.totalorder %s48, %s49
      %p58 = scmp.eq.s32.totalorder %s17, 0
      %p59 = por %p57, %p58
      %p60 = scmp.ne.s32.totalorder %s48, %s49
      %p61 = scmp.eq.s32.totalorder %s18, 1
      %p62 = por %p60, %p61
      %p64 = scmp.ne.s32.totalorder %s49, %s63
      %p65 = scmp.eq.s32.totalorder %s18, 0
      %p66 = por %p64, %p65
      %s67 = ssub.s32 %s12, %s19
      %p68 = scmp.eq.s32.totalorder %s67, 0
      %s70 = sadd.s32 %s69, 1
      %s71 = scalar_select %p68, %s69, %s70
      %p74 = pneg %p68
      %p75 = scmp.eq.s32.totalorder %s12, 1
      %p76 = por %p74, %p75
      %p77 = scmp.ne.s32.totalorder %s69, %s72
      %p78 = scmp.eq.s32.totalorder %s12, 0
      %p79 = por %p77, %p78
      %p80 = scmp.ne.s32.totalorder %s69, %s72
      %p81 = scmp.eq.s32.totalorder %s17, 1
      %p82 = por %p80, %p81
      %p83 = scmp.ne.s32.totalorder %s72, %s73
      %p84 = scmp.eq.s32.totalorder %s17, 0
      %p85 = por %p83, %p84
      %p86 = scmp.ne.s32.totalorder %s72, %s73
      %p87 = scmp.eq.s32.totalorder %s18, 1
      %p88 = por %p86, %p87
      %p90 = scmp.ne.s32.totalorder %s73, %s89
      %p91 = scmp.eq.s32.totalorder %s18, 0
      %p92 = por %p90, %p91
      %s93 = ssub.s32 %s12, %s19
      %p94 = scmp.eq.s32.totalorder %s93, 0
      %s96 = sadd.s32 %s95, 1
      %s97 = scalar_select %p94, %s95, %s96
      %p100 = pneg %p94
      %p101 = scmp.eq.s32.totalorder %s12, 1
      %p102 = por %p100, %p101
      %p103 = scmp.ne.s32.totalorder %s95, %s98
      %p104 = scmp.eq.s32.totalorder %s12, 0
      %p105 = por %p103, %p104
      %p106 = scmp.ne.s32.totalorder %s95, %s98
      %p107 = scmp.eq.s32.totalorder %s17, 1
      %p108 = por %p106, %p107
      %p109 = scmp.ne.s32.totalorder %s98, %s99
      %p110 = scmp.eq.s32.totalorder %s17, 0
      %p111 = por %p109, %p110
      %p112 = scmp.ne.s32.totalorder %s98, %s99
      %p113 = scmp.eq.s32.totalorder %s18, 1
      %p114 = por %p112, %p113
      %p116 = scmp.ne.s32.totalorder %s99, %s115
      %p117 = scmp.eq.s32.totalorder %s18, 0
      %p118 = por %p116, %p117
      %p119 = scmp.le.s32.totalorder 1, %s12
      %p120 = scmp.lt.s32.totalorder %s12, 3
      %p121 = pnand %p119, %p120
      %p122 = pneg %p121
      // Predicated region
      $region9: #{tpu_custom_call.1} parent=5 // pred_check
        _
      $region10: #{tpu_custom_call.1} parent=5 // pred_check_branch
        %124 = sbr.rel (%p121) target = $region12
      $region11: #{tpu_custom_call.1} parent=5 // pred_region
        %s125 = ssub.s32 %s12, 1
        // Predicated region
        $region13: #{tpu_custom_call.1} parent=11 // pred_check
          %p126 = pneg %p59
        $region14: #{tpu_custom_call.1} parent=11 // pred_check_branch
          %128 = sbr.rel (%p126) target = $region16
        $region15: #{tpu_custom_call.1} parent=11 // pred_region
          _
        $region16: #{tpu_custom_call.1} parent=11 // pred_fallthru
          _
      $region12: #{tpu_custom_call.1} parent=5 // pred_fallthru
        _
      %p129 = scmp.lt.s32.totalorder %s12, 2
      // Predicated region
      $region17: #{tpu_custom_call.1} parent=5 // pred_check
        %p130 = pneg %p129
      $region18: #{tpu_custom_call.1} parent=5 // pred_check_branch
        %132 = sbr.rel (%p130) target = $region20
      $region19: #{tpu_custom_call.1} parent=5 // pred_region
        // Predicated region
        $region21: #{tpu_custom_call.1} parent=19 // pred_check
          %p133 = pneg %p32
        $region22: #{tpu_custom_call.1} parent=19 // pred_check_branch
          %135 = sbr.rel (%p133) target = $region24
        $region23: #{tpu_custom_call.1} parent=19 // pred_region
          %s136 = smul.u32 16, %s12
          %p137 = scmp.lt.s32.totalorder %s136, 31
          %s138 = scalar_select %p137, %s136, 31
          %s139 = smul.addr %s138, 4
          %s140 = scalar_lea.vmem %s0, %s139
          %s141 = smul.u32 16, %s12
        $region24: #{tpu_custom_call.1} parent=19 // pred_fallthru
          _
        // Predicated region
        $region25: #{tpu_custom_call.1} parent=19 // pred_check
          %p142 = pneg %p79
        $region26: #{tpu_custom_call.1} parent=19 // pred_check_branch
          %144 = sbr.rel (%p142) target = $region28
        $region27: #{tpu_custom_call.1} parent=19 // pred_region
          %s145 = smul.u32 16, %s12
          %p146 = scmp.lt.s32.totalorder %s145, 31
          %s147 = scalar_select %p146, %s145, 31
          %s148 = smul.addr %s147, 8
          %s149 = scalar_lea.vmem %s2, %s148
          %s150 = smul.u32 16, %s12
        $region28: #{tpu_custom_call.1} parent=19 // pred_fallthru
          _
      $region20: #{tpu_custom_call.1} parent=5 // pred_fallthru
        _
      %p151 = scmp.le.s32.totalorder 1, %s12
      %p152 = scmp.lt.s32.totalorder %s12, 3
      %p153 = pnand %p151, %p152
      %p154 = pneg %p153
      // Predicated region
      $region29: #{tpu_custom_call.1} parent=5 // pred_check
        _
      $region30: #{tpu_custom_call.1} parent=5 // pred_check_branch
        %156 = sbr.rel (%p153) target = $region32
      $region31: #{tpu_custom_call.1} parent=5 // pred_region
        %s157 = ssub.s32 %s12, 1
        %s158 = smul.u32 16, %s17
        %p159 = scmp.lt.s32.totalorder %s158, 31
        %s160 = scalar_select %p159, %s158, 31
        %s161 = smul.addr %s160, 4
        %s162 = scalar_lea.vmem %s0, %s161
        %p163 = pneg %p38
        %p164 = pneg %p35
        %p165 = pneg %p59
        %p166 = pneg %p56
        %s167 = smul.u32 16, %s17
        %p168 = scmp.lt.s32.totalorder %s167, 31
        %s169 = scalar_select %p168, %s167, 31
        %s170 = smul.addr %s169, 8
        %s171 = scalar_lea.vmem %s2, %s170
        %p172 = pneg %p85
        %p173 = pneg %p82
        %p174 = pneg %p111
        %p175 = pneg %p108
        %s176 = sand.u32 %s98, 1
        %s177 = scalar_lea.sflag [#allocation3], %s176
        %s178 = sand.u32 %s98, 1
        %s179 = smul.addr %s178, 64
        %s180 = scalar_lea.vmem [#allocation2], %s179
        %s181 = smul.u32 16, %s17
        %p182 = scmp.lt.s32.totalorder %s181, 31
        %s183 = scalar_select %p182, %s181, 31
        %s184 = smul.addr %s183, 4
        %s185 = scalar_lea.vmem %s0, %s184
        %s186 = smul.u32 16, %s17
        %s187 = smul.u32 16, %s17
        %p188 = scmp.lt.s32.totalorder %s187, 31
        %s189 = scalar_select %p188, %s187, 31
        %s190 = smul.addr %s189, 8
        %s191 = scalar_lea.vmem %s2, %s190
        %s192 = smul.u32 16, %s17
        %s193 = smul.u32 16, %s17
        %v195 = vld [vmem:[%s185] sm:$0xf]
        %v196 = vld [vmem:[%s185 + $0x4] sm:$0xf]
        %v197 = vld [vmem:[%s185 + $0x8] sm:$0xf]
        %v198 = vld [vmem:[%s185 + $0xc] sm:$0xf]
        %v199 = vld [vmem:[%s185 + $0x10] sm:$0xf]
        %v200 = vld [vmem:[%s185 + $0x14] sm:$0xf]
        %v201 = vld [vmem:[%s185 + $0x18] sm:$0xf]
        %v202 = vld [vmem:[%s185 + $0x1c] sm:$0xf]
        %v203 = vld [vmem:[%s185 + $0x20] sm:$0xf]
        %v204 = vld [vmem:[%s185 + $0x24] sm:$0xf]
        %v205 = vld [vmem:[%s185 + $0x28] sm:$0xf]
        %v206 = vld [vmem:[%s185 + $0x2c] sm:$0xf]
        %v207 = vld [vmem:[%s185 + $0x30] sm:$0xf]
        %v208 = vld [vmem:[%s185 + $0x34] sm:$0xf]
        %v209 = vld [vmem:[%s185 + $0x38] sm:$0xf]
        %v210 = vld [vmem:[%s185 + $0x3c] sm:$0xf]
        %v211 = vld [vmem:[%s1] sm:$0xf]
        %v212 = vld [vmem:[%s1 + $0x4] sm:$0xf]
        %v213 = vld [vmem:[%s1 + $0x8] sm:$0xf]
        %v214 = vld [vmem:[%s1 + $0xc] sm:$0xf]
        %v231 = vunpack.c.l.b16 %v195
        %v232 = vunpack.c.l.b16 %v196
        %v233 = vunpack.c.l.b16 %v197
        %v234 = vunpack.c.l.b16 %v198
        %v235 = vunpack.c.l.b16 %v199
        %v236 = vunpack.c.l.b16 %v200
        %v237 = vunpack.c.l.b16 %v201
        %v238 = vunpack.c.l.b16 %v202
        %v239 = vunpack.c.l.b16 %v203
        %v240 = vunpack.c.l.b16 %v204
        %v241 = vunpack.c.l.b16 %v205
        %v242 = vunpack.c.l.b16 %v206
        %v243 = vunpack.c.l.b16 %v207
        %v244 = vunpack.c.l.b16 %v208
        %v245 = vunpack.c.l.b16 %v209
        %v246 = vunpack.c.l.b16 %v210
        %v247 = vpack.c.b16 %v232, %v231
        %v248 = vpack.c.b16 %v234, %v233
        %v249 = vpack.c.b16 %v236, %v235
        %v250 = vpack.c.b16 %v238, %v237
        %v251 = vpack.c.b16 %v240, %v239
        %v252 = vpack.c.b16 %v242, %v241
        %v253 = vpack.c.b16 %v244, %v243
        %v254 = vpack.c.b16 %v246, %v245
        %v259 = vunpack.c.l.b16 %v211
        %v260 = vunpack.c.l.b16 %v212
        %v261 = vunpack.c.l.b16 %v213
        %v262 = vunpack.c.l.b16 %v214
        %v263 = vpack.c.b16 %v260, %v259
        %v264 = vpack.c.b16 %v262, %v261
        %vm267 = vcmask 261120
        %v269 = vsel %vm267, %v247, 0
        %v272 = vsel %vm267, %v248, 0
        %v275 = vsel %vm267, %v249, 0
        %v278 = vsel %vm267, %v250, 0
        %v281 = vsel %vm267, %v251, 0
        %v284 = vsel %vm267, %v252, 0
        %v287 = vsel %vm267, %v253, 0
        %v290 = vsel %vm267, %v254, 0
        %292 = vmatpush.bf16.msra.mxu0 0
        %293 = vmatpush.bf16.msra.mxu0 0
        %294 = vmatpush.bf16.msra.mxu0 0
        %295 = vmatpush.bf16.msra.mxu0 0
        %296 = vmatpush.bf16.msra.mxu0 0
        %297 = vmatpush.bf16.msra.mxu0 0
        %298 = vmatpush.bf16.msra.mxu0 %v264
        %299 = vmatpush.bf16.msra.mxu0 %v263
        %300 = vmatmul.bf16.gmra.mxu0 %v269
        %v301 = vpop.f32.mrf.mxu0
        %v302 = vadd.f32 0.0, %v301
        %v303 = vpop.f32.mrf.mxu0
        %v304 = vadd.f32 0.0, %v303
        %305 = vmatmul.bf16.gmra.mxu0 %v272
        %v306 = vpop.f32.mrf.mxu0
        %v307 = vadd.f32 0.0, %v306
        %v308 = vpop.f32.mrf.mxu0
        %v309 = vadd.f32 0.0, %v308
        %310 = vmatmul.bf16.gmra.mxu0 %v275
        %v311 = vpop.f32.mrf.mxu0
        %v312 = vadd.f32 0.0, %v311
        %v313 = vpop.f32.mrf.mxu0
        %v314 = vadd.f32 0.0, %v313
        %315 = vmatmul.bf16.gmra.mxu0 %v278
        %v316 = vpop.f32.mrf.mxu0
        %v317 = vadd.f32 0.0, %v316
        %v318 = vpop.f32.mrf.mxu0
        %v319 = vadd.f32 0.0, %v318
        %320 = vmatmul.bf16.gmra.mxu0 %v281
        %v321 = vpop.f32.mrf.mxu0
        %v322 = vadd.f32 0.0, %v321
        %v323 = vpop.f32.mrf.mxu0
        %v324 = vadd.f32 0.0, %v323
        %325 = vmatmul.bf16.gmra.mxu0 %v284
        %v326 = vpop.f32.mrf.mxu0
        %v327 = vadd.f32 0.0, %v326
        %v328 = vpop.f32.mrf.mxu0
        %v329 = vadd.f32 0.0, %v328
        %330 = vmatmul.bf16.gmra.mxu0 %v287
        %v331 = vpop.f32.mrf.mxu0
        %v332 = vadd.f32 0.0, %v331
        %v333 = vpop.f32.mrf.mxu0
        %v334 = vadd.f32 0.0, %v333
        %335 = vmatmul.bf16.gmra.mxu0 %v290
        %v336 = vpop.f32.mrf.mxu0
        %v337 = vadd.f32 0.0, %v336
        %v338 = vpop.f32.mrf.mxu0
        %v339 = vadd.f32 0.0, %v338
        %340 = vdwg.mxu0
        %v341 = vld [vmem:[%s191] sm:$0xff]
        %v342 = vld [vmem:[%s191 + $0x8] sm:$0xff]
        %v343 = vld [vmem:[%s191 + $0x10] sm:$0xff]
        %v344 = vld [vmem:[%s191 + $0x18] sm:$0xff]
        %v345 = vld [vmem:[%s191 + $0x20] sm:$0xff]
        %v346 = vld [vmem:[%s191 + $0x28] sm:$0xff]
        %v347 = vld [vmem:[%s191 + $0x30] sm:$0xff]
        %v348 = vld [vmem:[%s191 + $0x38] sm:$0xff]
        %v349 = vld [vmem:[%s191 + $0x40] sm:$0xff]
        %v350 = vld [vmem:[%s191 + $0x48] sm:$0xff]
        %v351 = vld [vmem:[%s191 + $0x50] sm:$0xff]
        %v352 = vld [vmem:[%s191 + $0x58] sm:$0xff]
        %v353 = vld [vmem:[%s191 + $0x60] sm:$0xff]
        %v354 = vld [vmem:[%s191 + $0x68] sm:$0xff]
        %v355 = vld [vmem:[%s191 + $0x70] sm:$0xff]
        %v356 = vld [vmem:[%s191 + $0x78] sm:$0xff]
        %358 = vset.pattern.permute.xlu0 0
        %359 = vperm.xlu0 %358, %v341
        %v360 = vpop.permute.xlu0 %359
        %363 = vset.pattern.permute.xlu0 0
        %364 = vperm.xlu0 %363, %v342
        %v365 = vpop.permute.xlu0 %364
        %368 = vset.pattern.permute.xlu0 0
        %369 = vperm.xlu0 %368, %v343
        %v370 = vpop.permute.xlu0 %369
        %373 = vset.pattern.permute.xlu0 0
        %374 = vperm.xlu0 %373, %v344
        %v375 = vpop.permute.xlu0 %374
        %378 = vset.pattern.permute.xlu0 0
        %379 = vperm.xlu0 %378, %v345
        %v380 = vpop.permute.xlu0 %379
        %383 = vset.pattern.permute.xlu0 0
        %384 = vperm.xlu0 %383, %v346
        %v385 = vpop.permute.xlu0 %384
        %388 = vset.pattern.permute.xlu0 0
        %389 = vperm.xlu0 %388, %v347
        %v390 = vpop.permute.xlu0 %389
        %393 = vset.pattern.permute.xlu0 0
        %394 = vperm.xlu0 %393, %v348
        %v395 = vpop.permute.xlu0 %394
        %398 = vset.pattern.permute.xlu0 0
        %399 = vperm.xlu0 %398, %v349
        %v400 = vpop.permute.xlu0 %399
        %403 = vset.pattern.permute.xlu0 0
        %404 = vperm.xlu0 %403, %v350
        %v405 = vpop.permute.xlu0 %404
        %408 = vset.pattern.permute.xlu0 0
        %409 = vperm.xlu0 %408, %v351
        %v410 = vpop.permute.xlu0 %409
        %413 = vset.pattern.permute.xlu0 0
        %414 = vperm.xlu0 %413, %v352
        %v415 = vpop.permute.xlu0 %414
        %418 = vset.pattern.permute.xlu0 0
        %419 = vperm.xlu0 %418, %v353
        %v420 = vpop.permute.xlu0 %419
        %423 = vset.pattern.permute.xlu0 0
        %424 = vperm.xlu0 %423, %v354
        %v425 = vpop.permute.xlu0 %424
        %428 = vset.pattern.permute.xlu0 0
        %429 = vperm.xlu0 %428, %v355
        %v430 = vpop.permute.xlu0 %429
        %433 = vset.pattern.permute.xlu0 0
        %434 = vperm.xlu0 %433, %v356
        %v435 = vpop.permute.xlu0 %434
        %v437 = vmul.f32 %v302, %v360
        %v438 = vmul.f32 %v304, %v365
        %v439 = vmul.f32 %v307, %v370
        %v440 = vmul.f32 %v309, %v375
        %v441 = vmul.f32 %v312, %v380
        %v442 = vmul.f32 %v314, %v385
        %v443 = vmul.f32 %v317, %v390
        %v444 = vmul.f32 %v319, %v395
        %v445 = vmul.f32 %v322, %v400
        %v446 = vmul.f32 %v324, %v405
        %v447 = vmul.f32 %v327, %v410
        %v448 = vmul.f32 %v329, %v415
        %v449 = vmul.f32 %v332, %v420
        %v450 = vmul.f32 %v334, %v425
        %v451 = vmul.f32 %v337, %v430
        %v452 = vmul.f32 %v339, %v435
        %v453 = vpack.c.bf16 %v437, %v437
        %v454 = vpack.c.bf16 %v438, %v438
        %v455 = vpack.c.bf16 %v439, %v439
        %v456 = vpack.c.bf16 %v440, %v440
        %v457 = vpack.c.bf16 %v441, %v441
        %v458 = vpack.c.bf16 %v442, %v442
        %v459 = vpack.c.bf16 %v443, %v443
        %v460 = vpack.c.bf16 %v444, %v444
        %v461 = vpack.c.bf16 %v445, %v445
        %v462 = vpack.c.bf16 %v446, %v446
        %v463 = vpack.c.bf16 %v447, %v447
        %v464 = vpack.c.bf16 %v448, %v448
        %v465 = vpack.c.bf16 %v449, %v449
        %v466 = vpack.c.bf16 %v450, %v450
        %v467 = vpack.c.bf16 %v451, %v451
        %v468 = vpack.c.bf16 %v452, %v452
        %469 = vst [vmem:[%s180] sm:$0xf] %v453
        %470 = vst [vmem:[%s180 + $0x4] sm:$0xf] %v454
        %471 = vst [vmem:[%s180 + $0x8] sm:$0xf] %v455
        %472 = vst [vmem:[%s180 + $0xc] sm:$0xf] %v456
        %473 = vst [vmem:[%s180 + $0x10] sm:$0xf] %v457
        %474 = vst [vmem:[%s180 + $0x14] sm:$0xf] %v458
        %475 = vst [vmem:[%s180 + $0x18] sm:$0xf] %v459
        %476 = vst [vmem:[%s180 + $0x1c] sm:$0xf] %v460
        %477 = vst [vmem:[%s180 + $0x20] sm:$0xf] %v461
        %478 = vst [vmem:[%s180 + $0x24] sm:$0xf] %v462
        %479 = vst [vmem:[%s180 + $0x28] sm:$0xf] %v463
        %480 = vst [vmem:[%s180 + $0x2c] sm:$0xf] %v464
        %481 = vst [vmem:[%s180 + $0x30] sm:$0xf] %v465
        %482 = vst [vmem:[%s180 + $0x34] sm:$0xf] %v466
        %483 = vst [vmem:[%s180 + $0x38] sm:$0xf] %v467
        %484 = vst [vmem:[%s180 + $0x3c] sm:$0xf] %v468
        %s485 = sand.u32 %s98, 1
        %s486 = scalar_lea.sflag [#allocation3], %s485
        %s487 = sand.u32 %s98, 1
        %s488 = smul.addr %s487, 64
        %s489 = scalar_lea.vmem [#allocation2], %s488
        // Predicated region
        $region33: #{tpu_custom_call.1} parent=31 // pred_check
          %p490 = pneg %p108
        $region34: #{tpu_custom_call.1} parent=31 // pred_check_branch
          %492 = sbr.rel (%p490) target = $region36
        $region35: #{tpu_custom_call.1} parent=31 // pred_region
          %s493 = smul.u32 16, %s17
          %495 = vsyncadd %s486, 0
          %s496 = smul.addr %s493, 4
          %s497 = scalar_lea.hbm %s3, %s496
          %s498 = sshll.u32 %s489, 4
          %s499 = int_to_ptr.vmem [resolvable:$true] %s498
          %s500 = sshll.u32 %s497, 4
          %s501 = int_to_ptr.hbm [resolvable:$true] %s500
          %506 = dma.vmem_to_hbm [thread:$0]  %s499, 1024, %s501, %s486, 64, 64, 4
        $region36: #{tpu_custom_call.1} parent=31 // pred_fallthru
          _
      $region32: #{tpu_custom_call.1} parent=5 // pred_fallthru
        _
      %p507 = scmp.le.s32.totalorder 2, %s12
      // Predicated region
      $region37: #{tpu_custom_call.1} parent=5 // pred_check
        %p508 = pneg %p507
      $region38: #{tpu_custom_call.1} parent=5 // pred_check_branch
        %510 = sbr.rel (%p508) target = $region40
      $region39: #{tpu_custom_call.1} parent=5 // pred_region
        %s511 = ssub.s32 %s12, 2
        // Predicated region
        $region41: #{tpu_custom_call.1} parent=39 // pred_check
          %p512 = pneg %p114
        $region42: #{tpu_custom_call.1} parent=39 // pred_check_branch
          %514 = sbr.rel (%p512) target = $region44
        $region43: #{tpu_custom_call.1} parent=39 // pred_region
          %s515 = sand.u32 %s99, 1
          %s516 = scalar_lea.sflag [#allocation3], %s515
          %s517 = sand.u32 %s99, 1
          %s518 = smul.addr %s517, 64
          %s519 = scalar_lea.vmem [#allocation2], %s518
          %521 = dma.done %s516, 1024
        $region44: #{tpu_custom_call.1} parent=39 // pred_fallthru
          _
      $region40: #{tpu_custom_call.1} parent=5 // pred_fallthru
        _
    $region6: #{tpu_custom_call.1} parent=1 // loop_footer
      %s16 = sadd.s32 1, %s12
    $region7: #{tpu_custom_call.1} parent=1 // loop_footer_branch
      %11 = sbr.rel target = $region3
    $region8: #{tpu_custom_call.1} parent=1 // loop_exit
      _
    %522 = vsyncpa [#allocation3], 1
    %s523 = scalar_lea.sflag [#allocation3], 1
    %524 = vsyncpa %s523, 1

</llo_original>
